<compile_context>
chip_gen: v7x
topology: tpu7x:2x2x1
jax: 0.10.0
libtpu: 0.0.40
codegen_flags: <defaults>
</compile_context>

<pallas_src>
import jax
import jax.numpy as jnp
from jax.experimental import pallas as pl
from jax.experimental.pallas import tpu as pltpu


_VMEM_LIMIT = 48 * 1024 * 1024      # <= 64 MiB physical on v7x; plenty of headroom on v5e/v6e
_FUSED_SLAB_MAX = 6 * 1024 * 1024   # per-batch slab (f32 bytes); in+out double-buffered + temps < limit
_TILE_TARGET = 2 * 1024 * 1024      # per-step block bytes target (>=85% HBM roofline measured at 512+ lanes)


# --------------------------------------------------------------------------
# Kernels
# --------------------------------------------------------------------------
def _fused_kernel(x_ref, ws_ref, bs_ref, w2t_ref, c0_ref, be_ref, o_ref):
    """Single pass per batch slab: colsum -> u fold -> elementwise apply.

    x_ref : (TB, C, N)  input slab(s), caller dtype (upcast per tile)
    ws_ref: (C, 1)      folded concat-project weight  (Wq@wp_q + Wk@wp_k)
    bs_ref: (1,) SMEM   folded concat-project bias (scalar)
    w2t_ref:(C, C)      ((Wv @ We) / N)^T  -> u = w2t @ colsum(x) + c0
    c0_ref: (C, 1)      bv @ We
    be_ref: (C, 1)      expansion bias
    o_ref : (TB, C, N)  output slab(s)
    """
    for bb in range(x_ref.shape[0]):                    # TB is a small static block dim
        x = x_ref[bb].astype(jnp.float32)                                   # (C, N)
        xsum = jnp.sum(x, axis=-1, keepdims=True)                           # (C, 1)  f32 accumulate
        u = jnp.dot(w2t_ref[...], xsum,
                    preferred_element_type=jnp.float32) + c0_ref[...]       # (C, 1)  tiny, once/batch
        # per-token score on VPU/XLU (multiply + sublane reduce), NOT an M=1 matmul
        s = jnp.sum(x * ws_ref[...], axis=0, keepdims=True) + bs_ref[0]     # (1, N)
        o_ref[bb] = (x + be_ref[...] + u * jnp.maximum(s, 0.0)).astype(o_ref.dtype)


def _partial_sum_kernel(x_ref, s_ref):
    """Per-tile token partial sum (all-parallel grid; host finishes the reduce).

    x_ref: (1, C, TN)   s_ref: (1, 1, C, 1)
    """
    s_ref[0, 0] = jnp.sum(x_ref[0].astype(jnp.float32), axis=-1, keepdims=True)


def _apply_kernel(x_ref, ws_ref, bs_ref, u_ref, be_ref, o_ref):
    """Elementwise per-token pass for the large-slab fallback.

    x_ref: (1, C, TN)  ws_ref: (C, 1)  bs_ref: (1,) SMEM  u_ref: (1, C, 1)
    be_ref: (C, 1)     o_ref: (1, C, TN)
    """
    x = x_ref[0].astype(jnp.float32)                                        # (C, TN)
    s = jnp.sum(x * ws_ref[...], axis=0, keepdims=True) + bs_ref[0]         # (1, TN)
    o_ref[0] = (x + be_ref[...] + u_ref[0] * jnp.maximum(s, 0.0)).astype(o_ref.dtype)


# --------------------------------------------------------------------------
# Tiling helpers
# --------------------------------------------------------------------------
def _pick_tb(b, slab_bytes, target=_TILE_TARGET):
    """Batches per grid step for the fused path: amortize ~0.35us/step when slabs are
    tiny, but keep >= 2 grid steps so v7x megacore can still shard the batch axis."""
    if b <= 1:
        return 1
    tb = 1
    for cand in range(1, b // 2 + 1):
        if b % cand == 0 and cand * slab_bytes <= target:
            tb = cand
    return tb


def _pick_tn(n_tokens, c, target_bytes=_TILE_TARGET):
    """Token-tile width for the fallback path: multiple of 128, ~target_bytes per block
    (no artificial 2048 cap).  If no lane-aligned divisor of N exists, the caller pads
    N up to a multiple of the returned tile."""
    cap = max(128, (target_bytes // (4 * max(c, 1))) // 128 * 128)
    if n_tokens % 128 == 0:
        best = 128
        for t in range(128, min(cap, n_tokens) + 1, 128):
            if n_tokens % t == 0:
                best = t
        return best
    return min(cap, ((n_tokens + 127) // 128) * 128)


# --------------------------------------------------------------------------
# Wrapper
# --------------------------------------------------------------------------
@jax.jit
def concat_nonlocal_block(x_nchw, params):
    """x_nchw: (B, C, H, W). Returns (B, C, H, W) in the same dtype as the input."""
    B, C, H, W = x_nchw.shape
    N = H * W
    x_cn = x_nchw.reshape(B, C, N)     # metadata-only reshape; keep caller dtype (cast per-tile)

    f32 = jnp.float32
    wq = params["wq"].astype(f32); wk = params["wk"].astype(f32); wv = params["wv"].astype(f32)
    bq = params["bq"].astype(f32); bk = params["bk"].astype(f32); bv = params["bv"].astype(f32)
    wpq = params["wpq"].astype(f32); wpk = params["wpk"].astype(f32)
    we = params["we"].astype(f32)

    # Tiny host-side folds (O(C*E), O(C*C)); everything x-dependent happens in-kernel.
    w_s = wq @ wpq + wk @ wpk                               # (C, 1)
    b_s = (bq @ wpq + bk @ wpk).reshape(1)                  # (1,)  SMEM scalar
    w2 = (wv @ we) / N                                      # (C, C): colsum(x) @ w2 -> u (row form)
    w2t = w2.T                                              # (C, C): w2t @ colsum(x) -> u (col form)
    c0_row = bv @ we                                        # (1, C)
    c0_col = c0_row.T                                       # (C, 1)
    be_col = params["be"].astype(f32).T                     # (C, 1)

    def _cparams(sem):
        return pltpu.CompilerParams(dimension_semantics=sem, vmem_limit_bytes=_VMEM_LIMIT)

    slab_bytes = C * N * 4

    # ---- Fast path: fused single pass, whole per-batch slab resident in VMEM ----
    if slab_bytes <= _FUSED_SLAB_MAX:
        TB = _pick_tb(B, slab_bytes)
        out_cn = pl.pallas_call(
            _fused_kernel,
            out_shape=jax.ShapeDtypeStruct((B, C, N), x_cn.dtype),
            grid=(B // TB,),
            in_specs=[
                pl.BlockSpec((TB, C, N), lambda b: (b, 0, 0)),            # x slab
                pl.BlockSpec((C, 1), lambda b: (0, 0)),                   # w_s
                pl.BlockSpec(memory_space=pltpu.MemorySpace.SMEM),        # b_s scalar
                pl.BlockSpec((C, C), lambda b: (0, 0)),                   # w2t
                pl.BlockSpec((C, 1), lambda b: (0, 0)),                   # c0
                pl.BlockSpec((C, 1), lambda b: (0, 0)),                   # be
            ],
            out_specs=pl.BlockSpec((TB, C, N), lambda b: (b, 0, 0)),
            compiler_params=_cparams(("parallel",)),
        )(x_cn, w_s, b_s, w2t, c0_col, be_col)
        return out_cn.reshape(B, C, H, W)

    # ---- Fallback: slab too large for VMEM -> two streaming passes over token tiles ----
    TN = _pick_tn(N, C)
    N_pad = ((N + TN - 1) // TN) * TN
    if N_pad != N:
        # Zero-padding keeps the token sum exact; padded output columns are sliced off.
        # TODO(synk): a lane mask on the last tile would avoid this extra padded copy of x.
        x_cn = jnp.pad(x_cn, ((0, 0), (0, 0), (0, N_pad - N)))
    NT = N_pad // TN

    # Pass 1: per-tile partial token sums, all-parallel (megacore-friendly on v7x).
    partials = pl.pallas_call(
        _partial_sum_kernel,
        out_shape=jax.ShapeDtypeStruct((B, NT, C, 1), f32),
        grid=(B, NT),
        in_specs=[pl.BlockSpec((1, C, TN), lambda b, t: (b, 0, t))],
        out_specs=pl.BlockSpec((1, 1, C, 1), lambda b, t: (b, t, 0, 0)),
        compiler_params=_cparams(("parallel", "parallel")),
    )(x_cn)

    # Tiny host fold: colsum -> u  (W2 / c0 precomputed above, no extra full-HBM traffic).
    xsum = jnp.sum(partials[..., 0], axis=1)                # (B, C) f32
    u = (xsum @ w2 + c0_row)[..., None]                     # (B, C, 1)

    # Pass 2: elementwise per-token apply, tiled over tokens, all-parallel.
    out_cn = pl.pallas_call(
        _apply_kernel,
        out_shape=jax.ShapeDtypeStruct((B, C, N_pad), x_cn.dtype),
        grid=(B, NT),
        in_specs=[
            pl.BlockSpec((1, C, TN), lambda b, t: (b, 0, t)),             # x tile
            pl.BlockSpec((C, 1), lambda b, t: (0, 0)),                    # w_s
            pl.BlockSpec(memory_space=pltpu.MemorySpace.SMEM),            # b_s scalar
            pl.BlockSpec((1, C, 1), lambda b, t: (b, 0, 0)),              # u (per batch)
            pl.BlockSpec((C, 1), lambda b, t: (0, 0)),                    # be
        ],
        out_specs=pl.BlockSpec((1, C, TN), lambda b, t: (b, 0, t)),
        compiler_params=_cparams(("parallel", "parallel")),
    )(x_cn, w_s, b_s, u, be_col)

    return out_cn[:, :, :N].reshape(B, C, H, W)


# --------------------------------------------------------------------------
# Params + pure-JAX reference (literal transcription of the PyTorch forward)
# --------------------------------------------------------------------------
def init_params(key, in_channels, r=2):
    E = in_channels // r
    ks = jax.random.split(key, 8)
    scale = 0.1
    return {
        # conv weights stored transposed for token-layout matmuls:
        "wq": scale * jax.random.normal(ks[0], (in_channels, E), jnp.float32),   # (C, E)
        "bq": scale * jax.random.normal(ks[1], (1, E), jnp.float32),
        "wk": scale * jax.random.normal(ks[2], (in_channels, E), jnp.float32),
        "bk": scale * jax.random.normal(ks[3], (1, E), jnp.float32),
        "wv": scale * jax.random.normal(ks[4], (in_channels, E), jnp.float32),
        "bv": scale * jax.random.normal(ks[5], (1, E), jnp.float32),
        # concat_project weight (1, 2E, 1, 1) split into q-half / k-half, stored (E, 1)
        "wpq": scale * jax.random.normal(ks[6], (E, 1), jnp.float32),
        "wpk": scale * jax.random.normal(ks[7], (E, 1), jnp.float32),
        # expansion conv (C, E, 1, 1) stored transposed as (E, C)
        "we": scale * jax.random.normal(jax.random.fold_in(key, 100), (E, in_channels), jnp.float32),
        "be": scale * jax.random.normal(jax.random.fold_in(key, 101), (1, in_channels), jnp.float32),
    }


def reference_torch_semantics(x, p):
    """Literal transcription of the PyTorch forward (NCHW), for validation (B > 1 path)."""
    B, C, H, W = x.shape
    N = H * W
    E = p["wq"].shape[1]

    def conv1x1(inp, w_ce, b_1e):  # w_ce: (C_in, C_out)
        y = jnp.einsum("bchw,co->bohw", inp, w_ce)
        return y + b_1e[0][None, :, None, None]

    q = conv1x1(x, p["wq"], p["bq"]).reshape(B, E, N)                     # b c (h w)
    k = conv1x1(x, p["wk"], p["bk"]).reshape(B, E, N)
    v = conv1x1(x, p["wv"], p["bv"]).reshape(B, E, N).transpose(0, 2, 1)  # b (h w) c

    q_rep = jnp.broadcast_to(q[..., None], (B, E, N, N))
    k_rep = jnp.broadcast_to(k[..., None], (B, E, N, N))
    qk = jnp.concatenate([q_rep, k_rep], axis=1)                          # (B, 2E, N, N)
    wp = jnp.concatenate([p["wpq"][:, 0], p["wpk"][:, 0]])                # (2E,)
    attn = jax.nn.relu(jnp.einsum("bcnm,c->bnm", qk, wp))                 # (B, N, N)
    attn = attn / N
    embed = jnp.matmul(attn, v)                                           # (B, N, E)
    embed = embed.transpose(0, 2, 1).reshape(B, E, H, W)
    out = jnp.einsum("behw,ec->bchw", embed, p["we"]) + p["be"][0][None, :, None, None]
    return out + x


if __name__ == "__main__":
    key = jax.random.PRNGKey(0)
    k_x, k_p = jax.random.split(key)

    # TODO(synk): the PyTorch B==1 squeeze() branch is degenerate (its matmul would
    # error for N>1 in torch); only the standard B>1 path is implemented here.
    B, C, H, W = 2, 4, 16, 16   # -> embed_dim E = 2, N = 256 (fused path: one slab per batch)
    x = jax.random.normal(k_x, (B, C, H, W), jnp.float32)
    params = init_params(k_p, C, r=2)

    out = concat_nonlocal_block(x, params)
    out = jax.block_until_ready(out)

    ref = reference_torch_semantics(x, params)
    assert out.shape == (B, C, H, W)
    assert jnp.allclose(out, ref, atol=2e-3, rtol=2e-3), "mismatch vs reference"

    print("KERNEL_OK")
</pallas_src>

<mosaic_0001>
module attributes {stable_mosaic.version = 11 : i64} {
  func.func @_fused_kernel(%arg0: i32, %arg1: memref<1x4x256xf32, #tpu.memory_space<vmem>>, %arg2: memref<4x1xf32, #tpu.memory_space<vmem>>, %arg3: memref<1xf32, #tpu.memory_space<smem>>, %arg4: memref<4x4xf32, #tpu.memory_space<vmem>>, %arg5: memref<4x1xf32, #tpu.memory_space<vmem>>, %arg6: memref<4x1xf32, #tpu.memory_space<vmem>>, %arg7: memref<1x4x256xf32, #tpu.memory_space<vmem>>) attributes {dimension_semantics = [#tpu.dimension_semantics<parallel>], iteration_bounds = array<i64: 2>, scalar_prefetch = 0 : i64, scratch_operands = 0 : i64, tpu.core_type = #tpu.core_type<tc>, window_params = [{transform_indices = @transform_0, window_bounds = array<i64: 1, 4, 256>}, {pipeline_mode = #tpu.pipeline_mode<synchronous>, transform_indices = @transform_1, window_bounds = array<i64: 4, 1>}, {transform_indices = @transform_2, window_bounds = array<i64: 1>}, {pipeline_mode = #tpu.pipeline_mode<synchronous>, transform_indices = @transform_3, window_bounds = array<i64: 4, 4>}, {pipeline_mode = #tpu.pipeline_mode<synchronous>, transform_indices = @transform_4, window_bounds = array<i64: 4, 1>}, {pipeline_mode = #tpu.pipeline_mode<synchronous>, transform_indices = @transform_5, window_bounds = array<i64: 4, 1>}, {transform_indices = @transform_6, window_bounds = array<i64: 1, 4, 256>}]} {
    %c0 = arith.constant 0 : index
    %c0_0 = arith.constant 0 : index
    %c0_1 = arith.constant 0 : index
    %0 = vector.load %arg1[%c0, %c0_0, %c0_1] : memref<1x4x256xf32, #tpu.memory_space<vmem>>, vector<1x4x256xf32>
    %1 = vector.shape_cast %0 : vector<1x4x256xf32> to vector<4x256xf32>
    %cst = arith.constant dense<0.000000e+00> : vector<4xf32>
    %2 = vector.multi_reduction <add>, %1, %cst [1] : vector<4x256xf32> to vector<4xf32>
    %3 = vector.shape_cast %2 : vector<4xf32> to vector<4x1xf32>
    %c0_2 = arith.constant 0 : index
    %c0_3 = arith.constant 0 : index
    %4 = vector.load %arg4[%c0_2, %c0_3] : memref<4x4xf32, #tpu.memory_space<vmem>>, vector<4x4xf32>
    %cst_4 = arith.constant dense<0.000000e+00> : vector<4x1xf32>
    %5 = tpu.matmul %4, %3, %cst_4 {dimension_numbers = #tpu.dot_dimension_numbers<[1], [0], [0], [1], [0, 0, 1, 1], [], []>} : vector<4x4xf32>, vector<4x1xf32>, vector<4x1xf32> -> vector<4x1xf32>
    %c0_5 = arith.constant 0 : index
    %c0_6 = arith.constant 0 : index
    %6 = vector.load %arg5[%c0_5, %c0_6] : memref<4x1xf32, #tpu.memory_space<vmem>>, vector<4x1xf32>
    %7 = arith.addf %5, %6 : vector<4x1xf32>
    %c0_7 = arith.constant 0 : index
    %c0_8 = arith.constant 0 : index
    %8 = vector.load %arg2[%c0_7, %c0_8] : memref<4x1xf32, #tpu.memory_space<vmem>>, vector<4x1xf32>
    %9 = vector.broadcast %8 : vector<4x1xf32> to vector<4x256xf32>
    %10 = arith.mulf %1, %9 : vector<4x256xf32>
    %cst_9 = arith.constant dense<0.000000e+00> : vector<256xf32>
    %11 = vector.multi_reduction <add>, %10, %cst_9 [0] : vector<4x256xf32> to vector<256xf32>
    %12 = vector.shape_cast %11 : vector<256xf32> to vector<1x256xf32>
    %c0_10 = arith.constant 0 : index
    %13 = memref.load %arg3[%c0_10] : memref<1xf32, #tpu.memory_space<smem>>
    %14 = vector.broadcast %13 : f32 to vector<1x256xf32>
    %15 = arith.addf %12, %14 : vector<1x256xf32>
    %c0_11 = arith.constant 0 : index
    %c0_12 = arith.constant 0 : index
    %16 = vector.load %arg6[%c0_11, %c0_12] : memref<4x1xf32, #tpu.memory_space<vmem>>, vector<4x1xf32>
    %17 = vector.broadcast %16 : vector<4x1xf32> to vector<4x256xf32>
    %18 = arith.addf %1, %17 : vector<4x256xf32>
    %cst_13 = arith.constant 0.000000e+00 : f32
    %19 = vector.broadcast %cst_13 : f32 to vector<1x256xf32>
    %20 = arith.maximumf %15, %19 : vector<1x256xf32>
    %21 = vector.broadcast %7 : vector<4x1xf32> to vector<4x256xf32>
    %22 = vector.broadcast %20 : vector<1x256xf32> to vector<4x256xf32>
    %23 = arith.mulf %21, %22 : vector<4x256xf32>
    %24 = arith.addf %18, %23 : vector<4x256xf32>
    %c0_14 = arith.constant 0 : index
    %c0_15 = arith.constant 0 : index
    %c0_16 = arith.constant 0 : index
    %25 = vector.load %arg7[%c0_14, %c0_15, %c0_16] : memref<1x4x256xf32, #tpu.memory_space<vmem>>, vector<1x4x256xf32>
    %26 = vector.shape_cast %25 : vector<1x4x256xf32> to vector<4x256xf32>
    %27 = vector.shape_cast %24 : vector<4x256xf32> to vector<1x4x256xf32>
    tpu.vector_store %arg7[%c0_14, %c0_15, %c0_16], %27 {strides = array<i32>} : memref<1x4x256xf32, #tpu.memory_space<vmem>>, vector<1x4x256xf32>,
    return
  }
  func.func @transform_0(%arg0: i32) -> (i32, i32, i32) {
    %c0_i32 = arith.constant 0 : i32
    %c0_i32_0 = arith.constant 0 : i32
    %c0_i32_1 = arith.constant 0 : i32
    return %arg0, %c0_i32, %c0_i32_0 : i32, i32, i32
  }
  func.func @transform_1(%arg0: i32) -> (i32, i32) {
    %c0_i32 = arith.constant 0 : i32
    %c0_i32_0 = arith.constant 0 : i32
    %c0_i32_1 = arith.constant 0 : i32
    return %c0_i32, %c0_i32_0 : i32, i32
  }
  func.func @transform_2(%arg0: i32) -> i32 {
    %c0_i32 = arith.constant 0 : i32
    %c0_i32_0 = arith.constant 0 : i32
    return %c0_i32 : i32
  }
  func.func @transform_3(%arg0: i32) -> (i32, i32) {
    %c0_i32 = arith.constant 0 : i32
    %c0_i32_0 = arith.constant 0 : i32
    %c0_i32_1 = arith.constant 0 : i32
    return %c0_i32, %c0_i32_0 : i32, i32
  }
  func.func @transform_4(%arg0: i32) -> (i32, i32) {
    %c0_i32 = arith.constant 0 : i32
    %c0_i32_0 = arith.constant 0 : i32
    %c0_i32_1 = arith.constant 0 : i32
    return %c0_i32, %c0_i32_0 : i32, i32
  }
  func.func @transform_5(%arg0: i32) -> (i32, i32) {
    %c0_i32 = arith.constant 0 : i32
    %c0_i32_0 = arith.constant 0 : i32
    %c0_i32_1 = arith.constant 0 : i32
    return %c0_i32, %c0_i32_0 : i32, i32
  }
  func.func @transform_6(%arg0: i32) -> (i32, i32, i32) {
    %c0_i32 = arith.constant 0 : i32
    %c0_i32_0 = arith.constant 0 : i32
    %c0_i32_1 = arith.constant 0 : i32
    return %arg0, %c0_i32, %c0_i32_0 : i32, i32, i32
  }
}

</mosaic_0001>

<llo_original>
// kernel: concat_nonlocal_block.1
$region0: #{concat_nonlocal_block.1}
  #allocation0 [shape = 'u32[]', space=smem, size = 0x4, offset = 0x4, fixed_abs, tag = 'smem constant byte address 0x4 - core index']
  #allocation1 [shape = 'u32[144,128]{1,0:T(1,128)}', space=vmem, size = 0x12000, scoped, tag = 'internal scratch']
  #allocation2 [shape = 'f32[1]{0:T(128)S(6)}', space=smem, size = 0x200, scoped, tag = 'scoped memory for concat_nonlocal_block.1']
  %s0 = inlined_call_operand.vmem [shape: f32[2,4,256], index: 0, kind: input, shape index: {}]
  %s1 = inlined_call_operand.vmem [shape: f32[4,1], index: 1, kind: input, shape index: {}]
  %s2 = inlined_call_operand.<no memory space> [shape: f32[1], index: 2, kind: input, shape index: {}]
  %s3 = inlined_call_operand.vmem [shape: f32[4,4], index: 3, kind: input, shape index: {}]
  %s4 = inlined_call_operand.vmem [shape: f32[4,1], index: 4, kind: input, shape index: {}]
  %s5 = inlined_call_operand.vmem [shape: f32[4,1], index: 5, kind: input, shape index: {}]
  %s6 = inlined_call_operand.vmem [shape: f32[2,4,256], index: 6, kind: output, shape index: {}]
  %s7 = sld [smem:[#allocation0]]
  $region57: #{concat_nonlocal_block.1} parent=0
    _
  %s9 = ssub.s32 1, %s7
  %s10 = scalar_select 0, %s9, %s7
  %11 = sst [smem:[#allocation2]] %s2
  loop: start=0, step=1, limit=4
  $region2: #{concat_nonlocal_block.1} parent=0 // loop_pre_header
    _
  $region3: #{concat_nonlocal_block.1} parent=0 // loop_header
    %s13 = sphi 0, %s17
    %p14 = scmp.ge.s32.totalorder %s13, 4
    %s23 = sphi 0, %s25
    %s26 = sphi 0, %s23
    %s27 = sphi 0, %s26
    %s43 = sphi 0, %s27
    %s47 = sphi 0, %s47
    %s49 = sphi 0, %s47
    %s50 = sphi 0, %s49
    %s64 = sphi 0, %s50
    %s68 = sphi 0, %s68
    %s70 = sphi 0, %s68
    %s71 = sphi 0, %s70
    %s85 = sphi 0, %s71
    %s89 = sphi 0, %s89
    %s91 = sphi 0, %s89
    %s92 = sphi 0, %s91
    %s106 = sphi 0, %s92
    %s110 = sphi 0, %s110
    %s112 = sphi 0, %s110
    %s113 = sphi 0, %s112
    %s127 = sphi 0, %s113
    %s131 = sphi 0, %s131
    %s133 = sphi 0, %s131
    %s134 = sphi 0, %s133
    %s148 = sphi 0, %s134
    %s154 = sphi 0, %s156
    %s157 = sphi 0, %s154
    %s158 = sphi 0, %s157
    %s174 = sphi 0, %s158
  $region4: #{concat_nonlocal_block.1} parent=0 // loop_header_branch
    %16 = sbr.rel (%p14) target = $region8
  $region5: #{concat_nonlocal_block.1} parent=0 // loop_body
    %s18 = ssub.s32 %s13, 1
    %s19 = ssub.s32 %s13, 2
    %s20 = sadd.s32 %s13, 1
    %s21 = ssub.s32 %s13, %s20
    %p22 = scmp.eq.s32.totalorder %s21, 0
    %s24 = sadd.s32 %s23, 1
    %s25 = scalar_select %p22, %s23, %s24
    %p28 = pneg %p22
    %p29 = scmp.eq.s32.totalorder %s13, 1
    %p30 = por %p28, %p29
    %p31 = scmp.ne.s32.totalorder %s23, %s26
    %p32 = scmp.eq.s32.totalorder %s13, 0
    %p33 = por %p31, %p32
    %p34 = scmp.ne.s32.totalorder %s23, %s26
    %p35 = scmp.eq.s32.totalorder %s18, 1
    %p36 = por %p34, %p35
    %p37 = scmp.ne.s32.totalorder %s26, %s27
    %p38 = scmp.eq.s32.totalorder %s18, 0
    %p39 = por %p37, %p38
    %p40 = scmp.ne.s32.totalorder %s26, %s27
    %p41 = scmp.eq.s32.totalorder %s19, 1
    %p42 = por %p40, %p41
    %p44 = scmp.ne.s32.totalorder %s27, %s43
    %p45 = scmp.eq.s32.totalorder %s19, 0
    %p46 = por %p44, %p45
    %s48 = sadd.s32 %s47, 1
    %p51 = scmp.eq.s32.totalorder %s13, 1
    %p52 = scmp.ne.s32.totalorder %s47, %s49
    %p53 = scmp.eq.s32.totalorder %s13, 0
    %p54 = por %p52, %p53
    %p55 = scmp.ne.s32.totalorder %s47, %s49
    %p56 = scmp.eq.s32.totalorder %s18, 1
    %p57 = por %p55, %p56
    %p58 = scmp.ne.s32.totalorder %s49, %s50
    %p59 = scmp.eq.s32.totalorder %s18, 0
    %p60 = por %p58, %p59
    %p61 = scmp.ne.s32.totalorder %s49, %s50
    %p62 = scmp.eq.s32.totalorder %s19, 1
    %p63 = por %p61, %p62
    %p65 = scmp.ne.s32.totalorder %s50, %s64
    %p66 = scmp.eq.s32.totalorder %s19, 0
    %p67 = por %p65, %p66
    %s69 = sadd.s32 %s68, 1
    %p72 = scmp.eq.s32.totalorder %s13, 1
    %p73 = scmp.ne.s32.totalorder %s68, %s70
    %p74 = scmp.eq.s32.totalorder %s13, 0
    %p75 = por %p73, %p74
    %p76 = scmp.ne.s32.totalorder %s68, %s70
    %p77 = scmp.eq.s32.totalorder %s18, 1
    %p78 = por %p76, %p77
    %p79 = scmp.ne.s32.totalorder %s70, %s71
    %p80 = scmp.eq.s32.totalorder %s18, 0
    %p81 = por %p79, %p80
    %p82 = scmp.ne.s32.totalorder %s70, %s71
    %p83 = scmp.eq.s32.totalorder %s19, 1
    %p84 = por %p82, %p83
    %p86 = scmp.ne.s32.totalorder %s71, %s85
    %p87 = scmp.eq.s32.totalorder %s19, 0
    %p88 = por %p86, %p87
    %s90 = sadd.s32 %s89, 1
    %p93 = scmp.eq.s32.totalorder %s13, 1
    %p94 = scmp.ne.s32.totalorder %s89, %s91
    %p95 = scmp.eq.s32.totalorder %s13, 0
    %p96 = por %p94, %p95
    %p97 = scmp.ne.s32.totalorder %s89, %s91
    %p98 = scmp.eq.s32.totalorder %s18, 1
    %p99 = por %p97, %p98
    %p100 = scmp.ne.s32.totalorder %s91, %s92
    %p101 = scmp.eq.s32.totalorder %s18, 0
    %p102 = por %p100, %p101
    %p103 = scmp.ne.s32.totalorder %s91, %s92
    %p104 = scmp.eq.s32.totalorder %s19, 1
    %p105 = por %p103, %p104
    %p107 = scmp.ne.s32.totalorder %s92, %s106
    %p108 = scmp.eq.s32.totalorder %s19, 0
    %p109 = por %p107, %p108
    %s111 = sadd.s32 %s110, 1
    %p114 = scmp.eq.s32.totalorder %s13, 1
    %p115 = scmp.ne.s32.totalorder %s110, %s112
    %p116 = scmp.eq.s32.totalorder %s13, 0
    %p117 = por %p115, %p116
    %p118 = scmp.ne.s32.totalorder %s110, %s112
    %p119 = scmp.eq.s32.totalorder %s18, 1
    %p120 = por %p118, %p119
    %p121 = scmp.ne.s32.totalorder %s112, %s113
    %p122 = scmp.eq.s32.totalorder %s18, 0
    %p123 = por %p121, %p122
    %p124 = scmp.ne.s32.totalorder %s112, %s113
    %p125 = scmp.eq.s32.totalorder %s19, 1
    %p126 = por %p124, %p125
    %p128 = scmp.ne.s32.totalorder %s113, %s127
    %p129 = scmp.eq.s32.totalorder %s19, 0
    %p130 = por %p128, %p129
    %s132 = sadd.s32 %s131, 1
    %p135 = scmp.eq.s32.totalorder %s13, 1
    %p136 = scmp.ne.s32.totalorder %s131, %s133
    %p137 = scmp.eq.s32.totalorder %s13, 0
    %p138 = por %p136, %p137
    %p139 = scmp.ne.s32.totalorder %s131, %s133
    %p140 = scmp.eq.s32.totalorder %s18, 1
    %p141 = por %p139, %p140
    %p142 = scmp.ne.s32.totalorder %s133, %s134
    %p143 = scmp.eq.s32.totalorder %s18, 0
    %p144 = por %p142, %p143
    %p145 = scmp.ne.s32.totalorder %s133, %s134
    %p146 = scmp.eq.s32.totalorder %s19, 1
    %p147 = por %p145, %p146
    %p149 = scmp.ne.s32.totalorder %s134, %s148
    %p150 = scmp.eq.s32.totalorder %s19, 0
    %p151 = por %p149, %p150
    %s152 = ssub.s32 %s13, %s20
    %p153 = scmp.eq.s32.totalorder %s152, 0
    %s155 = sadd.s32 %s154, 1
    %s156 = scalar_select %p153, %s154, %s155
    %p159 = pneg %p153
    %p160 = scmp.eq.s32.totalorder %s13, 1
    %p161 = por %p159, %p160
    %p162 = scmp.ne.s32.totalorder %s154, %s157
    %p163 = scmp.eq.s32.totalorder %s13, 0
    %p164 = por %p162, %p163
    %p165 = scmp.ne.s32.totalorder %s154, %s157
    %p166 = scmp.eq.s32.totalorder %s18, 1
    %p167 = por %p165, %p166
    %p168 = scmp.ne.s32.totalorder %s157, %s158
    %p169 = scmp.eq.s32.totalorder %s18, 0
    %p170 = por %p168, %p169
    %p171 = scmp.ne.s32.totalorder %s157, %s158
    %p172 = scmp.eq.s32.totalorder %s19, 1
    %p173 = por %p171, %p172
    %p175 = scmp.ne.s32.totalorder %s158, %s174
    %p176 = scmp.eq.s32.totalorder %s19, 0
    %p177 = por %p175, %p176
    %p178 = scmp.le.s32.totalorder 1, %s13
    %p179 = scmp.lt.s32.totalorder %s13, 3
    %p180 = pnand %p178, %p179
    %p181 = pneg %p180
    // Predicated region
    $region9: #{concat_nonlocal_block.1} parent=5 // pred_check
      _
    $region10: #{concat_nonlocal_block.1} parent=5 // pred_check_branch
      %183 = sbr.rel (%p180) target = $region12
    $region11: #{concat_nonlocal_block.1} parent=5 // pred_region
      %s184 = ssub.s32 %s13, 1
      // Predicated region
      $region13: #{concat_nonlocal_block.1} parent=11 // pred_check
        %p185 = pneg %p60
      $region14: #{concat_nonlocal_block.1} parent=11 // pred_check_branch
        %187 = sbr.rel (%p185) target = $region16
      $region15: #{concat_nonlocal_block.1} parent=11 // pred_region
        _
      $region16: #{concat_nonlocal_block.1} parent=11 // pred_fallthru
        _
      // Predicated region
      $region17: #{concat_nonlocal_block.1} parent=11 // pred_check
        %p188 = pneg %p81
      $region18: #{concat_nonlocal_block.1} parent=11 // pred_check_branch
        %190 = sbr.rel (%p188) target = $region20
      $region19: #{concat_nonlocal_block.1} parent=11 // pred_region
        _
      $region20: #{concat_nonlocal_block.1} parent=11 // pred_fallthru
        _
      // Predicated region
      $region21: #{concat_nonlocal_block.1} parent=11 // pred_check
        %p191 = pneg %p102
      $region22: #{concat_nonlocal_block.1} parent=11 // pred_check_branch
        %193 = sbr.rel (%p191) target = $region24
      $region23: #{concat_nonlocal_block.1} parent=11 // pred_region
        _
      $region24: #{concat_nonlocal_block.1} parent=11 // pred_fallthru
        _
      // Predicated region
      $region25: #{concat_nonlocal_block.1} parent=11 // pred_check
        %p194 = pneg %p123
      $region26: #{concat_nonlocal_block.1} parent=11 // pred_check_branch
        %196 = sbr.rel (%p194) target = $region28
      $region27: #{concat_nonlocal_block.1} parent=11 // pred_region
        _
      $region28: #{concat_nonlocal_block.1} parent=11 // pred_fallthru
        _
      // Predicated region
      $region29: #{concat_nonlocal_block.1} parent=11 // pred_check
        %p197 = pneg %p144
      $region30: #{concat_nonlocal_block.1} parent=11 // pred_check_branch
        %199 = sbr.rel (%p197) target = $region32
      $region31: #{concat_nonlocal_block.1} parent=11 // pred_region
        _
      $region32: #{concat_nonlocal_block.1} parent=11 // pred_fallthru
        _
    $region12: #{concat_nonlocal_block.1} parent=5 // pred_fallthru
      _
    %p200 = scmp.lt.s32.totalorder %s13, 2
    // Predicated region
    $region33: #{concat_nonlocal_block.1} parent=5 // pred_check
      %p201 = pneg %p200
    $region34: #{concat_nonlocal_block.1} parent=5 // pred_check_branch
      %203 = sbr.rel (%p201) target = $region36
    $region35: #{concat_nonlocal_block.1} parent=5 // pred_region
      // Predicated region
      $region37: #{concat_nonlocal_block.1} parent=35 // pred_check
        %p204 = pneg %p33
      $region38: #{concat_nonlocal_block.1} parent=35 // pred_check_branch
        %206 = sbr.rel (%p204) target = $region40
      $region39: #{concat_nonlocal_block.1} parent=35 // pred_region
        %p207 = scmp.lt.s32.totalorder %s13, 1
        %s208 = scalar_select %p207, %s13, 1
        %s209 = smul.addr %s208, 2
        %s210 = smul.addr %s209, 4
        %s211 = scalar_lea.vmem %s0, %s210
      $region40: #{concat_nonlocal_block.1} parent=35 // pred_fallthru
        _
    $region36: #{concat_nonlocal_block.1} parent=5 // pred_fallthru
      _
    %p212 = scmp.le.s32.totalorder 1, %s13
    %p213 = scmp.lt.s32.totalorder %s13, 3
    %p214 = pnand %p212, %p213
    %p215 = pneg %p214
    // Predicated region
    $region41: #{concat_nonlocal_block.1} parent=5 // pred_check
      _
    $region42: #{concat_nonlocal_block.1} parent=5 // pred_check_branch
      %217 = sbr.rel (%p214) target = $region44
    $region43: #{concat_nonlocal_block.1} parent=5 // pred_region
      %s218 = ssub.s32 %s13, 1
      %p219 = scmp.lt.s32.totalorder %s18, 1
      %s220 = scalar_select %p219, %s18, 1
      %s221 = smul.addr %s220, 2
      %s222 = smul.addr %s221, 4
      %s223 = scalar_lea.vmem %s0, %s222
      %p224 = pneg %p39
      %p225 = pneg %p36
      %p226 = pneg %p60
      %p227 = pneg %p57
      %p228 = pneg %p81
      %p229 = pneg %p78
      %p230 = pneg %p102
      %p231 = pneg %p99
      %p232 = pneg %p123
      %p233 = pneg %p120
      %p234 = pneg %p144
      %p235 = pneg %p141
      %p236 = pneg %p170
      %p237 = pneg %p167
      %p238 = scmp.lt.s32.totalorder %s18, 1
      %s239 = scalar_select %p238, %s18, 1
      %s240 = smul.addr %s239, 2
      %s241 = smul.addr %s240, 4
      %s242 = scalar_lea.vmem %s6, %s241
      %p243 = scmp.lt.s32.totalorder %s18, 1
      %s244 = scalar_select %p243, %s18, 1
      %s245 = smul.addr %s244, 2
      %s246 = smul.addr %s245, 4
      %s247 = scalar_lea.vmem %s0, %s246
      %p248 = scmp.lt.s32.totalorder %s18, 1
      %s249 = scalar_select %p248, %s18, 1
      %s250 = smul.addr %s249, 2
      %s251 = smul.addr %s250, 4
      %s252 = scalar_lea.vmem %s6, %s251
      %v253 = vld [vmem:[%s247] sm:$0xff]
      %v255 = vcombine.high %v253, %v253
      %vm257 = vcmask 1043456
      %v258 = vsel %vm257, %v253, 0.0
      %v259 = vsel %vm257, %v255, 0.0
      %v260 = vadd.f32 %v258, %v259
      %261 = vadd.xlane.f32.xlu0 %v260
      %v262 = vpop.xlane.xlu0 %261
      %v263 = vld [vmem:[%s3] sm:$0xf]
      %v264 = vld [vmem:[%s4] sm:$0xf]
      %vm265 = vcmask 31744
      %v267 = vsel %vm265, %v263, 0
      %v270 = vsel %vm257, %v262, 0
      %272 = vmatprep.subr.mxu0 0.0
      %273 = vmatpush1.msra.mxu0 %v270
      %274 = vmatprep.subr.mxu0 0.0
      %275 = vmatpush1.msra.mxu0 0.0
      %276 = vmatprep.subr.mxu0 0.0
      %277 = vmatpush1.msra.mxu0 0.0
      %278 = vmatprep.subr.mxu0 0.0
      %279 = vmatpush1.msra.mxu0 0.0
      %280 = vmatprep.subr.mxu0 0.0
      %281 = vmatpush1.msra.mxu0 0.0
      %282 = vmatprep.subr.mxu0 0.0
      %283 = vmatpush1.msra.mxu0 0.0
      %284 = vmatprep.subr.mxu0 0.0
      %285 = vmatpush1.msra.mxu0 0.0
      %286 = vmatprep.subr.mxu0 0.0
      %287 = vmatpush1.msra.mxu0 0.0
      %288 = vmatprep.subr.mxu0 0.0
      %289 = vmatpush1.msra.mxu0 0.0
      %290 = vmatprep.subr.mxu0 0.0
      %291 = vmatpush1.msra.mxu0 0.0
      %292 = vmatprep.subr.mxu0 0.0
      %293 = vmatpush1.msra.mxu0 0.0
      %294 = vmatprep.subr.mxu0 0.0
      %295 = vmatpush1.msra.mxu0 0.0
      %296 = vmatprep.subr.mxu0 0.0
      %297 = vmatpush1.msra.mxu0 0.0
      %298 = vmatprep.subr.mxu0 0.0
      %299 = vmatpush1.msra.mxu0 0.0
      %300 = vmatprep.subr.mxu0 0.0
      %301 = vmatpush1.msra.mxu0 0.0
      %302 = vmatprep.subr.mxu0 0.0
      %303 = vmatpush1.msra.mxu0 0.0
      %304 = vmatprep.subr.mxu0 0.0
      %305 = vmatpush1.msra.mxu0 0.0
      %306 = vmatprep.subr.mxu0 0.0
      %307 = vmatpush1.msra.mxu0 0.0
      %308 = vmatprep.subr.mxu0 0.0
      %309 = vmatpush1.msra.mxu0 0.0
      %310 = vmatprep.subr.mxu0 0.0
      %311 = vmatpush1.msra.mxu0 0.0
      %312 = vmatprep.subr.mxu0 0.0
      %313 = vmatpush1.msra.mxu0 0.0
      %314 = vmatprep.subr.mxu0 0.0
      %315 = vmatpush1.msra.mxu0 0.0
      %316 = vmatprep.subr.mxu0 0.0
      %317 = vmatpush1.msra.mxu0 0.0
      %318 = vmatprep.subr.mxu0 0.0
      %319 = vmatpush1.msra.mxu0 0.0
      %320 = vmatprep.subr.mxu0 0.0
      %321 = vmatpush1.msra.mxu0 0.0
      %322 = vmatprep.subr.mxu0 0.0
      %323 = vmatpush1.msra.mxu0 0.0
      %324 = vmatprep.subr.mxu0 0.0
      %325 = vmatpush1.msra.mxu0 0.0
      %326 = vmatprep.subr.mxu0 0.0
      %327 = vmatpush1.msra.mxu0 0.0
      %328 = vmatprep.subr.mxu0 0.0
      %329 = vmatpush1.msra.mxu0 0.0
      %330 = vmatprep.subr.mxu0 0.0
      %331 = vmatpush1.msra.mxu0 0.0
      %332 = vmatprep.subr.mxu0 0.0
      %333 = vmatpush1.msra.mxu0 0.0
      %334 = vmatprep.subr.mxu0 0.0
      %335 = vmatpush1.msra.mxu0 0.0
      %336 = vmatprep.mubr.f32.mxu0 0.0
      %337 = vmatmul.mubr.f32.gmra.mrb[0].mxu0 %v267
      %v338 = vpop.f32.mrb[0].mxu0
      %v339 = vadd.f32 %v264, %v338
      %v340 = vpop.f32.mrb[0].mxu0
      %341 = vdwg.mxu0
      %v342 = vld [vmem:[%s1] sm:$0xf]
      %344 = vset.pattern.permute.xlu0 0
      %345 = vperm.xlu0 %344, %v342
      %v346 = vpop.permute.xlu0 %345
      %v348 = vunpack.c.l.s4 839922192
      %v349 = vunpack.c.0.s8 %v348
      %v350 = vlaneseq
      %v351 = vshrl.u32 %v350, 7
      %v352 = vsub.s32 %v349, %v351
      %v353 = vrot.slane %v346, %v352
      %v355 = vmul.f32 %v253, %v353
      %v357 = vcombine.high %v355, %v355
      %v359 = vsel %vm257, %v355, 0.0
      %v360 = vrot.slane %v359, 4
      %v361 = vadd.f32 %v359, %v360
      %v362 = vrot.slane %v361, 2
      %v363 = vadd.f32 %v361, %v362
      %v364 = vrot.slane %v363, 1
      %v365 = vadd.f32 %v363, %v364
      %v366 = vsel %vm257, %v357, 0.0
      %v367 = vrot.slane %v366, 4
      %v368 = vadd.f32 %v366, %v367
      %v369 = vrot.slane %v368, 2
      %v370 = vadd.f32 %v368, %v369
      %v371 = vrot.slane %v370, 1
      %v372 = vadd.f32 %v370, %v371
      %s373 = sld [smem:[#allocation2]]
      %v374 = vstv %s373
      %v375 = vadd.f32 %v365, %v374
      %v376 = vadd.f32 %v372, %v374
      %v377 = vld [vmem:[%s5] sm:$0xf]
      %379 = vset.pattern.permute.xlu0 0
      %380 = vperm.xlu0 %379, %v377
      %v381 = vpop.permute.xlu0 %380
      %v383 = vunpack.c.l.s4 839922192
      %v384 = vunpack.c.0.s8 %v383
      %v385 = vlaneseq
      %v386 = vshrl.u32 %v385, 7
      %v387 = vsub.s32 %v384, %v386
      %v388 = vrot.slane %v381, %v387
      %v390 = vadd.f32 %v253, %v388
      %v391 = vmax.f32 %v375, 0.0
      %v392 = vmax.f32 %v376, 0.0
      %394 = vset.pattern.permute.xlu0 0
      %395 = vperm.xlu0 %394, %v339
      %v396 = vpop.permute.xlu0 %395
      %v398 = vmul.f32 %v396, %v391
      %v399 = vmul.f32 %v396, %v392
      %v402 = vcombine.low %v398, %v399
      %v404 = vadd.f32 %v390, %v402
      %405 = vst [vmem:[%s252] sm:$0xff] %v404
      %p406 = scmp.lt.s32.totalorder %s18, 1
      %s407 = scalar_select %p406, %s18, 1
      %s408 = smul.addr %s407, 2
      %s409 = smul.addr %s408, 4
      %s410 = scalar_lea.vmem %s6, %s409
      // Predicated region
      $region45: #{concat_nonlocal_block.1} parent=43 // pred_check
        %p411 = pneg %p167
      $region46: #{concat_nonlocal_block.1} parent=43 // pred_check_branch
        %413 = sbr.rel (%p411) target = $region48
      $region47: #{concat_nonlocal_block.1} parent=43 // pred_region
        _
      $region48: #{concat_nonlocal_block.1} parent=43 // pred_fallthru
        _
    $region44: #{concat_nonlocal_block.1} parent=5 // pred_fallthru
      _
    %p414 = scmp.le.s32.totalorder 2, %s13
    // Predicated region
    $region49: #{concat_nonlocal_block.1} parent=5 // pred_check
      %p415 = pneg %p414
    $region50: #{concat_nonlocal_block.1} parent=5 // pred_check_branch
      %417 = sbr.rel (%p415) target = $region52
    $region51: #{concat_nonlocal_block.1} parent=5 // pred_region
      %s418 = ssub.s32 %s13, 2
      // Predicated region
      $region53: #{concat_nonlocal_block.1} parent=51 // pred_check
        %p419 = pneg %p173
      $region54: #{concat_nonlocal_block.1} parent=51 // pred_check_branch
        %421 = sbr.rel (%p419) target = $region56
      $region55: #{concat_nonlocal_block.1} parent=51 // pred_region
        %p422 = scmp.lt.s32.totalorder %s19, 1
        %s423 = scalar_select %p422, %s19, 1
        %s424 = smul.addr %s423, 2
        %s425 = smul.addr %s424, 4
        %s426 = scalar_lea.vmem %s6, %s425
      $region56: #{concat_nonlocal_block.1} parent=51 // pred_fallthru
        _
    $region52: #{concat_nonlocal_block.1} parent=5 // pred_fallthru
      _
  $region6: #{concat_nonlocal_block.1} parent=0 // loop_footer
    %s17 = sadd.s32 1, %s13
  $region7: #{concat_nonlocal_block.1} parent=0 // loop_footer_branch
    %12 = sbr.rel target = $region3
  $region8: #{concat_nonlocal_block.1} parent=0 // loop_exit
    _

</llo_original>
